<compile_context>
chip_gen: v5e
topology: v5e:2x2
jax: 0.10.0
libtpu: 0.0.40
codegen_flags: <defaults>
</compile_context>

<pallas_src>
import functools

import jax
import jax.numpy as jnp
from jax.experimental import pallas as pl
from jax.experimental.pallas import tpu as pltpu

_LANES = 128
_SUBLANES = 8
_TILE_UNIT = _LANES * _SUBLANES  # 1024: keeps batch tiles (8,128)-aligned


def _mlp_softmax_kernel(w1_ref, b1_ref, w2_ref, b2_ref, x_ref, o_ref, *,
                        d_in, d_hid, num_classes):
    """x_ref: (d_in, rows, 128) VMEM; w*/b*: SMEM scalars; o_ref: (C, rows, 128)."""
    # Dense (rows, 128) slabs per input feature -> full 8-sublane vregs.
    x = [x_ref[k] for k in range(d_in)]

    # ---- Linear(2, 5) + ReLU : unrolled scalar-broadcast FMAs on the VPU ----
    h = []
    for j in range(d_hid):
        acc = x[0] * w1_ref[0, j] + b1_ref[j]
        for k in range(1, d_in):
            acc = acc + x[k] * w1_ref[k, j]
        h.append(jnp.maximum(acc, 0.0))

    # ---- Linear(5, C) + ReLU ----
    z = []
    for c in range(num_classes):
        acc = h[0] * w2_ref[0, c] + b2_ref[c]
        for j in range(1, d_hid):
            acc = acc + h[j] * w2_ref[j, c]
        z.append(jnp.maximum(acc, 0.0))

    # ---- Softmax over the (static) class axis: purely elementwise VPU/EUP ----
    if num_classes == 2:
        # softmax([z0, z1]) == [1 - sigmoid(d), sigmoid(d)], d = z1 - z0.
        # Stable form: one exp, one reciprocal, no max pass.
        d = z[1] - z[0]
        e = jnp.exp(-jnp.abs(d))                 # in (0, 1], always finite
        denom = 1.0 + e
        inv = pl.reciprocal(denom, approx=True)
        inv = inv * (2.0 - denom * inv)          # one Newton step -> ~f32 exact
        p_hi = inv                               # prob of the larger logit
        p_lo = e * inv
        pos = d >= 0.0
        o_ref[0] = jnp.where(pos, p_lo, p_hi)    # unmasked full-vreg stores
        o_ref[1] = jnp.where(pos, p_hi, p_lo)
    else:
        m = z[0]
        for c in range(1, num_classes):
            m = jnp.maximum(m, z[c])
        es = [jnp.exp(zc - m) for zc in z]
        denom = es[0]
        for c in range(1, num_classes):
            denom = denom + es[c]
        inv = pl.reciprocal(denom, approx=True)
        inv = inv * (2.0 - denom * inv)          # Newton refine: err ~1e-8
        for c in range(num_classes):
            o_ref[c] = es[c] * inv


def _round_up(v, m):
    return ((v + m - 1) // m) * m


def simple_logistic_regression(x, w1, b1, w2, b2, *, tb=262144):
    """x: (B, 2) f32; w1: (2, 5); b1: (5,); w2: (5, C); b2: (C,) -> (B, C)."""
    B, d_in = x.shape
    d_hid = w1.shape[1]
    num_classes = w2.shape[1]

    # Batch tile: multiple of 1024 (so each slab is rows%8==0 x 128 lanes),
    # capped by the padded batch.
    b_min = _round_up(B, _TILE_UNIT)
    tb = max(_TILE_UNIT, min(_round_up(tb, _TILE_UNIT), b_min))
    # Keep >= 2 grid steps when the batch allows, so v7x's two TensorCores both
    # run under the "parallel" grid axis (no effect on single-TC v5e/v6e).
    if tb >= b_min and b_min >= 2 * _TILE_UNIT:
        tb = _round_up(pl.cdiv(b_min, 2), _TILE_UNIT)
    grid = pl.cdiv(b_min, tb)
    b_pad = grid * tb
    rows = tb // _LANES

    x = x.astype(jnp.float32)
    x_pad = jnp.pad(x, ((0, b_pad - B), (0, 0))) if b_pad != B else x
    # Feature-major dense layout (d_in, b_pad//128, 128); single fused XLA
    # transpose+reshape.  Zero-padded samples stay finite through the net and
    # are sliced off below.
    x_3d = x_pad.T.reshape(d_in, b_pad // _LANES, _LANES)

    smem = pl.BlockSpec(memory_space=pltpu.MemorySpace.SMEM)
    kernel = functools.partial(
        _mlp_softmax_kernel, d_in=d_in, d_hid=d_hid, num_classes=num_classes)

    out_3d = pl.pallas_call(
        kernel,
        out_shape=jax.ShapeDtypeStruct(
            (num_classes, b_pad // _LANES, _LANES), jnp.float32),
        grid=(grid,),
        in_specs=[
            smem,                                                  # w1 (d_in, d_hid)
            smem,                                                  # b1 (d_hid,)
            smem,                                                  # w2 (d_hid, C)
            smem,                                                  # b2 (C,)
            pl.BlockSpec((d_in, rows, _LANES), lambda i: (0, i, 0)),
        ],
        out_specs=pl.BlockSpec((num_classes, rows, _LANES), lambda i: (0, i, 0)),
        compiler_params=pltpu.CompilerParams(
            dimension_semantics=("parallel",),
        ),
    )(w1.astype(jnp.float32), b1.astype(jnp.float32),
      w2.astype(jnp.float32), b2.astype(jnp.float32), x_3d)

    # Back to the module's (B, C) layout.
    return out_3d.reshape(num_classes, b_pad)[:, :B].T


def _reference(x, w1, b1, w2, b2):
    h = jnp.maximum(x @ w1 + b1, 0.0)
    z = jnp.maximum(h @ w2 + b2, 0.0)
    return jax.nn.softmax(z, axis=1)


if __name__ == "__main__":
    key = jax.random.PRNGKey(0)
    k_x, k_w1, k_b1, k_w2, k_b2 = jax.random.split(key, 5)

    B, D_IN, D_HID, NUM_CLASSES = 200, 2, 5, 2

    x = jax.random.normal(k_x, (B, D_IN), dtype=jnp.float32)

    # Deterministic init mimicking torch.nn.Linear (uniform +/- 1/sqrt(fan_in)).
    lim1 = 1.0 / jnp.sqrt(jnp.float32(D_IN))
    w1 = jax.random.uniform(k_w1, (D_IN, D_HID), jnp.float32, -lim1, lim1)
    b1 = jax.random.uniform(k_b1, (D_HID,), jnp.float32, -lim1, lim1)
    lim2 = 1.0 / jnp.sqrt(jnp.float32(D_HID))
    w2 = jax.random.uniform(k_w2, (D_HID, NUM_CLASSES), jnp.float32, -lim2, lim2)
    b2 = jax.random.uniform(k_b2, (NUM_CLASSES,), jnp.float32, -lim2, lim2)

    fwd = jax.jit(simple_logistic_regression)
    out = jax.block_until_ready(fwd(x, w1, b1, w2, b2))

    ref = _reference(x, w1, b1, w2, b2)
    assert out.shape == (B, NUM_CLASSES)
    assert jnp.allclose(out, ref, atol=1e-5, rtol=1e-5), "mismatch vs reference"

    print("KERNEL_OK")
</pallas_src>

<mosaic_0001>
module attributes {stable_mosaic.version = 11 : i64} {
  func.func @_mlp_softmax_kernel(%arg0: i32, %arg1: memref<2x5xf32, #tpu.memory_space<smem>>, %arg2: memref<5xf32, #tpu.memory_space<smem>>, %arg3: memref<5x2xf32, #tpu.memory_space<smem>>, %arg4: memref<2xf32, #tpu.memory_space<smem>>, %arg5: memref<2x8x128xf32, #tpu.memory_space<vmem>>, %arg6: memref<2x8x128xf32, #tpu.memory_space<vmem>>) attributes {dimension_semantics = [#tpu.dimension_semantics<parallel>], iteration_bounds = array<i64: 1>, scalar_prefetch = 0 : i64, scratch_operands = 0 : i64, tpu.core_type = #tpu.core_type<tc>, window_params = [{transform_indices = @transform_0, window_bounds = array<i64: 2, 5>}, {transform_indices = @transform_1, window_bounds = array<i64: 5>}, {transform_indices = @transform_2, window_bounds = array<i64: 5, 2>}, {transform_indices = @transform_3, window_bounds = array<i64: 2>}, {transform_indices = @transform_4, window_bounds = array<i64: 2, 8, 128>}, {transform_indices = @transform_5, window_bounds = array<i64: 2, 8, 128>}]} {
    %c0 = arith.constant 0 : index
    %c0_0 = arith.constant 0 : index
    %c0_1 = arith.constant 0 : index
    %0 = vector.load %arg5[%c0, %c0_0, %c0_1] : memref<2x8x128xf32, #tpu.memory_space<vmem>>, vector<1x8x128xf32>
    %1 = vector.shape_cast %0 : vector<1x8x128xf32> to vector<8x128xf32>
    %c1 = arith.constant 1 : index
    %c0_2 = arith.constant 0 : index
    %c0_3 = arith.constant 0 : index
    %2 = vector.load %arg5[%c1, %c0_2, %c0_3] : memref<2x8x128xf32, #tpu.memory_space<vmem>>, vector<1x8x128xf32>
    %3 = vector.shape_cast %2 : vector<1x8x128xf32> to vector<8x128xf32>
    %c0_4 = arith.constant 0 : index
    %c0_5 = arith.constant 0 : index
    %4 = memref.load %arg1[%c0_4, %c0_5] : memref<2x5xf32, #tpu.memory_space<smem>>
    %5 = vector.broadcast %4 : f32 to vector<8x128xf32>
    %6 = arith.mulf %1, %5 : vector<8x128xf32>
    %c0_6 = arith.constant 0 : index
    %7 = memref.load %arg2[%c0_6] : memref<5xf32, #tpu.memory_space<smem>>
    %8 = vector.broadcast %7 : f32 to vector<8x128xf32>
    %9 = arith.addf %6, %8 : vector<8x128xf32>
    %c1_7 = arith.constant 1 : index
    %c0_8 = arith.constant 0 : index
    %10 = memref.load %arg1[%c1_7, %c0_8] : memref<2x5xf32, #tpu.memory_space<smem>>
    %11 = vector.broadcast %10 : f32 to vector<8x128xf32>
    %12 = arith.mulf %3, %11 : vector<8x128xf32>
    %13 = arith.addf %9, %12 : vector<8x128xf32>
    %cst = arith.constant 0.000000e+00 : f32
    %14 = vector.broadcast %cst : f32 to vector<8x128xf32>
    %15 = arith.maximumf %13, %14 : vector<8x128xf32>
    %c0_9 = arith.constant 0 : index
    %c1_10 = arith.constant 1 : index
    %16 = memref.load %arg1[%c0_9, %c1_10] : memref<2x5xf32, #tpu.memory_space<smem>>
    %17 = vector.broadcast %16 : f32 to vector<8x128xf32>
    %18 = arith.mulf %1, %17 : vector<8x128xf32>
    %c1_11 = arith.constant 1 : index
    %19 = memref.load %arg2[%c1_11] : memref<5xf32, #tpu.memory_space<smem>>
    %20 = vector.broadcast %19 : f32 to vector<8x128xf32>
    %21 = arith.addf %18, %20 : vector<8x128xf32>
    %c1_12 = arith.constant 1 : index
    %c1_13 = arith.constant 1 : index
    %22 = memref.load %arg1[%c1_12, %c1_13] : memref<2x5xf32, #tpu.memory_space<smem>>
    %23 = vector.broadcast %22 : f32 to vector<8x128xf32>
    %24 = arith.mulf %3, %23 : vector<8x128xf32>
    %25 = arith.addf %21, %24 : vector<8x128xf32>
    %cst_14 = arith.constant 0.000000e+00 : f32
    %26 = vector.broadcast %cst_14 : f32 to vector<8x128xf32>
    %27 = arith.maximumf %25, %26 : vector<8x128xf32>
    %c0_15 = arith.constant 0 : index
    %c2 = arith.constant 2 : index
    %28 = memref.load %arg1[%c0_15, %c2] : memref<2x5xf32, #tpu.memory_space<smem>>
    %29 = vector.broadcast %28 : f32 to vector<8x128xf32>
    %30 = arith.mulf %1, %29 : vector<8x128xf32>
    %c2_16 = arith.constant 2 : index
    %31 = memref.load %arg2[%c2_16] : memref<5xf32, #tpu.memory_space<smem>>
    %32 = vector.broadcast %31 : f32 to vector<8x128xf32>
    %33 = arith.addf %30, %32 : vector<8x128xf32>
    %c1_17 = arith.constant 1 : index
    %c2_18 = arith.constant 2 : index
    %34 = memref.load %arg1[%c1_17, %c2_18] : memref<2x5xf32, #tpu.memory_space<smem>>
    %35 = vector.broadcast %34 : f32 to vector<8x128xf32>
    %36 = arith.mulf %3, %35 : vector<8x128xf32>
    %37 = arith.addf %33, %36 : vector<8x128xf32>
    %cst_19 = arith.constant 0.000000e+00 : f32
    %38 = vector.broadcast %cst_19 : f32 to vector<8x128xf32>
    %39 = arith.maximumf %37, %38 : vector<8x128xf32>
    %c0_20 = arith.constant 0 : index
    %c3 = arith.constant 3 : index
    %40 = memref.load %arg1[%c0_20, %c3] : memref<2x5xf32, #tpu.memory_space<smem>>
    %41 = vector.broadcast %40 : f32 to vector<8x128xf32>
    %42 = arith.mulf %1, %41 : vector<8x128xf32>
    %c3_21 = arith.constant 3 : index
    %43 = memref.load %arg2[%c3_21] : memref<5xf32, #tpu.memory_space<smem>>
    %44 = vector.broadcast %43 : f32 to vector<8x128xf32>
    %45 = arith.addf %42, %44 : vector<8x128xf32>
    %c1_22 = arith.constant 1 : index
    %c3_23 = arith.constant 3 : index
    %46 = memref.load %arg1[%c1_22, %c3_23] : memref<2x5xf32, #tpu.memory_space<smem>>
    %47 = vector.broadcast %46 : f32 to vector<8x128xf32>
    %48 = arith.mulf %3, %47 : vector<8x128xf32>
    %49 = arith.addf %45, %48 : vector<8x128xf32>
    %cst_24 = arith.constant 0.000000e+00 : f32
    %50 = vector.broadcast %cst_24 : f32 to vector<8x128xf32>
    %51 = arith.maximumf %49, %50 : vector<8x128xf32>
    %c0_25 = arith.constant 0 : index
    %c4 = arith.constant 4 : index
    %52 = memref.load %arg1[%c0_25, %c4] : memref<2x5xf32, #tpu.memory_space<smem>>
    %53 = vector.broadcast %52 : f32 to vector<8x128xf32>
    %54 = arith.mulf %1, %53 : vector<8x128xf32>
    %c4_26 = arith.constant 4 : index
    %55 = memref.load %arg2[%c4_26] : memref<5xf32, #tpu.memory_space<smem>>
    %56 = vector.broadcast %55 : f32 to vector<8x128xf32>
    %57 = arith.addf %54, %56 : vector<8x128xf32>
    %c1_27 = arith.constant 1 : index
    %c4_28 = arith.constant 4 : index
    %58 = memref.load %arg1[%c1_27, %c4_28] : memref<2x5xf32, #tpu.memory_space<smem>>
    %59 = vector.broadcast %58 : f32 to vector<8x128xf32>
    %60 = arith.mulf %3, %59 : vector<8x128xf32>
    %61 = arith.addf %57, %60 : vector<8x128xf32>
    %cst_29 = arith.constant 0.000000e+00 : f32
    %62 = vector.broadcast %cst_29 : f32 to vector<8x128xf32>
    %63 = arith.maximumf %61, %62 : vector<8x128xf32>
    %c0_30 = arith.constant 0 : index
    %c0_31 = arith.constant 0 : index
    %64 = memref.load %arg3[%c0_30, %c0_31] : memref<5x2xf32, #tpu.memory_space<smem>>
    %65 = vector.broadcast %64 : f32 to vector<8x128xf32>
    %66 = arith.mulf %15, %65 : vector<8x128xf32>
    %c0_32 = arith.constant 0 : index
    %67 = memref.load %arg4[%c0_32] : memref<2xf32, #tpu.memory_space<smem>>
    %68 = vector.broadcast %67 : f32 to vector<8x128xf32>
    %69 = arith.addf %66, %68 : vector<8x128xf32>
    %c1_33 = arith.constant 1 : index
    %c0_34 = arith.constant 0 : index
    %70 = memref.load %arg3[%c1_33, %c0_34] : memref<5x2xf32, #tpu.memory_space<smem>>
    %71 = vector.broadcast %70 : f32 to vector<8x128xf32>
    %72 = arith.mulf %27, %71 : vector<8x128xf32>
    %73 = arith.addf %69, %72 : vector<8x128xf32>
    %c2_35 = arith.constant 2 : index
    %c0_36 = arith.constant 0 : index
    %74 = memref.load %arg3[%c2_35, %c0_36] : memref<5x2xf32, #tpu.memory_space<smem>>
    %75 = vector.broadcast %74 : f32 to vector<8x128xf32>
    %76 = arith.mulf %39, %75 : vector<8x128xf32>
    %77 = arith.addf %73, %76 : vector<8x128xf32>
    %c3_37 = arith.constant 3 : index
    %c0_38 = arith.constant 0 : index
    %78 = memref.load %arg3[%c3_37, %c0_38] : memref<5x2xf32, #tpu.memory_space<smem>>
    %79 = vector.broadcast %78 : f32 to vector<8x128xf32>
    %80 = arith.mulf %51, %79 : vector<8x128xf32>
    %81 = arith.addf %77, %80 : vector<8x128xf32>
    %c4_39 = arith.constant 4 : index
    %c0_40 = arith.constant 0 : index
    %82 = memref.load %arg3[%c4_39, %c0_40] : memref<5x2xf32, #tpu.memory_space<smem>>
    %83 = vector.broadcast %82 : f32 to vector<8x128xf32>
    %84 = arith.mulf %63, %83 : vector<8x128xf32>
    %85 = arith.addf %81, %84 : vector<8x128xf32>
    %cst_41 = arith.constant 0.000000e+00 : f32
    %86 = vector.broadcast %cst_41 : f32 to vector<8x128xf32>
    %87 = arith.maximumf %85, %86 : vector<8x128xf32>
    %c0_42 = arith.constant 0 : index
    %c1_43 = arith.constant 1 : index
    %88 = memref.load %arg3[%c0_42, %c1_43] : memref<5x2xf32, #tpu.memory_space<smem>>
    %89 = vector.broadcast %88 : f32 to vector<8x128xf32>
    %90 = arith.mulf %15, %89 : vector<8x128xf32>
    %c1_44 = arith.constant 1 : index
    %91 = memref.load %arg4[%c1_44] : memref<2xf32, #tpu.memory_space<smem>>
    %92 = vector.broadcast %91 : f32 to vector<8x128xf32>
    %93 = arith.addf %90, %92 : vector<8x128xf32>
    %c1_45 = arith.constant 1 : index
    %c1_46 = arith.constant 1 : index
    %94 = memref.load %arg3[%c1_45, %c1_46] : memref<5x2xf32, #tpu.memory_space<smem>>
    %95 = vector.broadcast %94 : f32 to vector<8x128xf32>
    %96 = arith.mulf %27, %95 : vector<8x128xf32>
    %97 = arith.addf %93, %96 : vector<8x128xf32>
    %c2_47 = arith.constant 2 : index
    %c1_48 = arith.constant 1 : index
    %98 = memref.load %arg3[%c2_47, %c1_48] : memref<5x2xf32, #tpu.memory_space<smem>>
    %99 = vector.broadcast %98 : f32 to vector<8x128xf32>
    %100 = arith.mulf %39, %99 : vector<8x128xf32>
    %101 = arith.addf %97, %100 : vector<8x128xf32>
    %c3_49 = arith.constant 3 : index
    %c1_50 = arith.constant 1 : index
    %102 = memref.load %arg3[%c3_49, %c1_50] : memref<5x2xf32, #tpu.memory_space<smem>>
    %103 = vector.broadcast %102 : f32 to vector<8x128xf32>
    %104 = arith.mulf %51, %103 : vector<8x128xf32>
    %105 = arith.addf %101, %104 : vector<8x128xf32>
    %c4_51 = arith.constant 4 : index
    %c1_52 = arith.constant 1 : index
    %106 = memref.load %arg3[%c4_51, %c1_52] : memref<5x2xf32, #tpu.memory_space<smem>>
    %107 = vector.broadcast %106 : f32 to vector<8x128xf32>
    %108 = arith.mulf %63, %107 : vector<8x128xf32>
    %109 = arith.addf %105, %108 : vector<8x128xf32>
    %cst_53 = arith.constant 0.000000e+00 : f32
    %110 = vector.broadcast %cst_53 : f32 to vector<8x128xf32>
    %111 = arith.maximumf %109, %110 : vector<8x128xf32>
    %112 = arith.subf %111, %87 : vector<8x128xf32>
    %113 = math.absf %112 : vector<8x128xf32>
    %cst_54 = arith.constant 0.000000e+00 : f32
    %114 = vector.broadcast %cst_54 : f32 to vector<8x128xf32>
    %115 = arith.subf %114, %113 : vector<8x128xf32>
    %116 = math.exp %115 : vector<8x128xf32>
    %cst_55 = arith.constant 1.000000e+00 : f32
    %117 = vector.broadcast %cst_55 : f32 to vector<8x128xf32>
    %118 = arith.addf %117, %116 : vector<8x128xf32>
    %119 = tpu.reciprocal %118 {approx = true} : vector<8x128xf32> -> vector<8x128xf32>
    %120 = arith.mulf %118, %119 : vector<8x128xf32>
    %cst_56 = arith.constant 2.000000e+00 : f32
    %121 = vector.broadcast %cst_56 : f32 to vector<8x128xf32>
    %122 = arith.subf %121, %120 : vector<8x128xf32>
    %123 = arith.mulf %119, %122 : vector<8x128xf32>
    %124 = arith.mulf %116, %123 : vector<8x128xf32>
    %cst_57 = arith.constant 0.000000e+00 : f32
    %125 = vector.broadcast %cst_57 : f32 to vector<8x128xf32>
    %126 = arith.cmpf oge, %112, %125 : vector<8x128xf32>
    %127 = arith.select %126, %124, %123 : vector<8x128xi1>, vector<8x128xf32>
    %c0_58 = arith.constant 0 : index
    %c0_59 = arith.constant 0 : index
    %c0_60 = arith.constant 0 : index
    %128 = vector.load %arg6[%c0_58, %c0_59, %c0_60] : memref<2x8x128xf32, #tpu.memory_space<vmem>>, vector<1x8x128xf32>
    %129 = vector.shape_cast %128 : vector<1x8x128xf32> to vector<8x128xf32>
    %130 = vector.shape_cast %127 : vector<8x128xf32> to vector<1x8x128xf32>
    tpu.vector_store %arg6[%c0_58, %c0_59, %c0_60], %130 {strides = array<i32>} : memref<2x8x128xf32, #tpu.memory_space<vmem>>, vector<1x8x128xf32>,
    %131 = arith.select %126, %123, %124 : vector<8x128xi1>, vector<8x128xf32>
    %c1_61 = arith.constant 1 : index
    %c0_62 = arith.constant 0 : index
    %c0_63 = arith.constant 0 : index
    %132 = vector.load %arg6[%c1_61, %c0_62, %c0_63] : memref<2x8x128xf32, #tpu.memory_space<vmem>>, vector<1x8x128xf32>
    %133 = vector.shape_cast %132 : vector<1x8x128xf32> to vector<8x128xf32>
    %134 = vector.shape_cast %131 : vector<8x128xf32> to vector<1x8x128xf32>
    tpu.vector_store %arg6[%c1_61, %c0_62, %c0_63], %134 {strides = array<i32>} : memref<2x8x128xf32, #tpu.memory_space<vmem>>, vector<1x8x128xf32>,
    return
  }
  func.func @transform_0(%arg0: i32) -> (i32, i32) {
    %c0_i32 = arith.constant 0 : i32
    %c0_i32_0 = arith.constant 0 : i32
    %c0_i32_1 = arith.constant 0 : i32
    return %c0_i32, %c0_i32_0 : i32, i32
  }
  func.func @transform_1(%arg0: i32) -> i32 {
    %c0_i32 = arith.constant 0 : i32
    %c0_i32_0 = arith.constant 0 : i32
    return %c0_i32 : i32
  }
  func.func @transform_2(%arg0: i32) -> (i32, i32) {
    %c0_i32 = arith.constant 0 : i32
    %c0_i32_0 = arith.constant 0 : i32
    %c0_i32_1 = arith.constant 0 : i32
    return %c0_i32, %c0_i32_0 : i32, i32
  }
  func.func @transform_3(%arg0: i32) -> i32 {
    %c0_i32 = arith.constant 0 : i32
    %c0_i32_0 = arith.constant 0 : i32
    return %c0_i32 : i32
  }
  func.func @transform_4(%arg0: i32) -> (i32, i32, i32) {
    %c0_i32 = arith.constant 0 : i32
    %c0_i32_0 = arith.constant 0 : i32
    %c0_i32_1 = arith.constant 0 : i32
    return %c0_i32, %arg0, %c0_i32_0 : i32, i32, i32
  }
  func.func @transform_5(%arg0: i32) -> (i32, i32, i32) {
    %c0_i32 = arith.constant 0 : i32
    %c0_i32_0 = arith.constant 0 : i32
    %c0_i32_1 = arith.constant 0 : i32
    return %c0_i32, %arg0, %c0_i32_0 : i32, i32, i32
  }
}

</mosaic_0001>

<llo_original>
// kernel: simple_logistic_regression.1
$region0: #{simple_logistic_regression.1}
  #allocation0 [shape = 'u32[]', space=smem, size = 0x4, offset = 0x4, fixed_abs, tag = 'smem constant byte address 0x4 - core index']
  #allocation1 [shape = 'u32[72,128]{1,0:T(1,128)}', space=vmem, size = 0x9000, scoped, tag = 'internal scratch']
  %s0 = inlined_call_operand.vmem [shape: f32[2,5], index: 0, kind: input, shape index: {}]
  %s1 = inlined_call_operand.vmem [shape: f32[5], index: 1, kind: input, shape index: {}]
  %s2 = inlined_call_operand.vmem [shape: f32[5,2], index: 2, kind: input, shape index: {}]
  %s3 = inlined_call_operand.vmem [shape: f32[2], index: 3, kind: input, shape index: {}]
  %s4 = inlined_call_operand.vmem [shape: f32[2,8,128], index: 4, kind: input, shape index: {}]
  %s5 = inlined_call_operand.vmem [shape: f32[2,8,128], index: 5, kind: output, shape index: {}]
  %s6 = sld [smem:[#allocation0]]
  $region46: #{simple_logistic_regression.1} parent=0
    _
  %s8 = ssub.s32 1, %s6
  %s9 = scalar_select 0, %s8, %s6
  $region1: #{simple_logistic_regression.1} parent=0
    #allocation2 [shape = 'u8[1024]{0}', space=smem, size = 0x400, scoped, tag = 'input window, operand 0, single buffered']
    #allocation3 [shape = 's32[1]{0}', space=sflag, size = 0x4, scoped, tag = 'scoped memory for simple_logistic_regression.1']
    #allocation4 [shape = 'u8[512]{0}', space=smem, size = 0x200, scoped, tag = 'input window, operand 1, single buffered']
    #allocation5 [shape = 's32[1]{0}', space=sflag, size = 0x4, scoped, tag = 'scoped memory for simple_logistic_regression.1']
    #allocation6 [shape = 'u8[4096]{0}', space=smem, size = 0x1000, scoped, tag = 'input window, operand 2, single buffered']
    #allocation7 [shape = 'u8[512]{0}', space=smem, size = 0x200, scoped, tag = 'input window, operand 3, single buffered']
    #allocation8 [shape = 's32[1]{0}', space=sflag, size = 0x4, scoped, tag = 'scoped memory for simple_logistic_regression.1']
    %10 = vsyncpa [#allocation3], 0
    %11 = vsyncpa [#allocation5], 0
    %12 = vsyncpa [#allocation8], 0
    // Predicated region
    $region2: #{simple_logistic_regression.1} parent=1 // pred_check
      _
    $region3: #{simple_logistic_regression.1} parent=1 // pred_check_branch
      %14 = sbr.rel (0) target = $region5
    $region4: #{simple_logistic_regression.1} parent=1 // pred_region
      %16 = vsyncadd [#allocation3], 0
      %s18 = sshll.u32 %s0, 4
      %s19 = int_to_ptr.vmem [resolvable:$true] %s18
      %21 = dma.vmem_to_smem %s19, 32, [#allocation2], [#allocation3]
    $region5: #{simple_logistic_regression.1} parent=1 // pred_fallthru
      _
    // Predicated region
    $region6: #{simple_logistic_regression.1} parent=1 // pred_check
      _
    $region7: #{simple_logistic_regression.1} parent=1 // pred_check_branch
      %23 = sbr.rel (0) target = $region9
    $region8: #{simple_logistic_regression.1} parent=1 // pred_region
      %25 = vsyncadd [#allocation5], 0
      %s27 = sshll.u32 %s1, 4
      %s28 = int_to_ptr.vmem [resolvable:$true] %s27
      %30 = dma.vmem_to_smem %s28, 16, [#allocation4], [#allocation5]
    $region9: #{simple_logistic_regression.1} parent=1 // pred_fallthru
      _
    // Predicated region
    $region10: #{simple_logistic_regression.1} parent=1 // pred_check
      _
    $region11: #{simple_logistic_regression.1} parent=1 // pred_check_branch
      %32 = sbr.rel (0) target = $region13
    $region12: #{simple_logistic_regression.1} parent=1 // pred_region
      %34 = vsyncadd [#allocation5], 0
      %s36 = sshll.u32 %s2, 4
      %s37 = int_to_ptr.vmem [resolvable:$true] %s36
      %39 = dma.vmem_to_smem %s37, 128, [#allocation6], [#allocation5]
    $region13: #{simple_logistic_regression.1} parent=1 // pred_fallthru
      _
    // Predicated region
    $region14: #{simple_logistic_regression.1} parent=1 // pred_check
      _
    $region15: #{simple_logistic_regression.1} parent=1 // pred_check_branch
      %41 = sbr.rel (0) target = $region17
    $region16: #{simple_logistic_regression.1} parent=1 // pred_region
      %43 = vsyncadd [#allocation8], 0
      %s45 = sshll.u32 %s3, 4
      %s46 = int_to_ptr.vmem [resolvable:$true] %s45
      %48 = dma.vmem_to_smem %s46, 16, [#allocation7], [#allocation8]
    $region17: #{simple_logistic_regression.1} parent=1 // pred_fallthru
      _
    // Predicated region
    $region18: #{simple_logistic_regression.1} parent=1 // pred_check
      _
    $region19: #{simple_logistic_regression.1} parent=1 // pred_check_branch
      %50 = sbr.rel (0) target = $region21
    $region20: #{simple_logistic_regression.1} parent=1 // pred_region
      _
    $region21: #{simple_logistic_regression.1} parent=1 // pred_fallthru
      _
    // Predicated region
    $region22: #{simple_logistic_regression.1} parent=1 // pred_check
      _
    $region23: #{simple_logistic_regression.1} parent=1 // pred_check_branch
      %52 = sbr.rel (0) target = $region25
    $region24: #{simple_logistic_regression.1} parent=1 // pred_region
      %54 = dma.done [#allocation3], 32
    $region25: #{simple_logistic_regression.1} parent=1 // pred_fallthru
      _
    // Predicated region
    $region26: #{simple_logistic_regression.1} parent=1 // pred_check
      _
    $region27: #{simple_logistic_regression.1} parent=1 // pred_check_branch
      %56 = sbr.rel (0) target = $region29
    $region28: #{simple_logistic_regression.1} parent=1 // pred_region
      %58 = dma.done [#allocation5], 16
    $region29: #{simple_logistic_regression.1} parent=1 // pred_fallthru
      _
    // Predicated region
    $region30: #{simple_logistic_regression.1} parent=1 // pred_check
      _
    $region31: #{simple_logistic_regression.1} parent=1 // pred_check_branch
      %60 = sbr.rel (0) target = $region33
    $region32: #{simple_logistic_regression.1} parent=1 // pred_region
      %62 = dma.done [#allocation5], 128
    $region33: #{simple_logistic_regression.1} parent=1 // pred_fallthru
      _
    // Predicated region
    $region34: #{simple_logistic_regression.1} parent=1 // pred_check
      _
    $region35: #{simple_logistic_regression.1} parent=1 // pred_check_branch
      %64 = sbr.rel (0) target = $region37
    $region36: #{simple_logistic_regression.1} parent=1 // pred_region
      %66 = dma.done [#allocation8], 16
    $region37: #{simple_logistic_regression.1} parent=1 // pred_fallthru
      _
    %67 = sfence
    %v68 = vld [vmem:[%s4] sm:$0xff]
    %s69 = scalar_lea.vmem %s4, 8
    %v70 = vld [vmem:[%s69] sm:$0xff]
    %s71 = sld [smem:[#allocation2]]
    %v72 = vstv %s71
    %v73 = vmul.f32 %v68, %v72
    %s74 = sld [smem:[#allocation4]]
    %v75 = vstv %s74
    %v76 = vadd.f32 %v73, %v75
    %s77 = sld [smem:[#allocation2 + $0x80]]
    %v78 = vstv %s77
    %v79 = vmul.f32 %v70, %v78
    %v80 = vadd.f32 %v76, %v79
    %v81 = vmax.f32 %v80, 0.0
    %s82 = sld [smem:[#allocation2 + $0x1]]
    %v83 = vstv %s82
    %v84 = vmul.f32 %v68, %v83
    %s85 = sld [smem:[#allocation4 + $0x1]]
    %v86 = vstv %s85
    %v87 = vadd.f32 %v84, %v86
    %s88 = sld [smem:[#allocation2 + $0x81]]
    %v89 = vstv %s88
    %v90 = vmul.f32 %v70, %v89
    %v91 = vadd.f32 %v87, %v90
    %v92 = vmax.f32 %v91, 0.0
    %s93 = sld [smem:[#allocation2 + $0x2]]
    %v94 = vstv %s93
    %v95 = vmul.f32 %v68, %v94
    %s96 = sld [smem:[#allocation4 + $0x2]]
    %v97 = vstv %s96
    %v98 = vadd.f32 %v95, %v97
    %s99 = sld [smem:[#allocation2 + $0x82]]
    %v100 = vstv %s99
    %v101 = vmul.f32 %v70, %v100
    %v102 = vadd.f32 %v98, %v101
    %v103 = vmax.f32 %v102, 0.0
    %s104 = sld [smem:[#allocation2 + $0x3]]
    %v105 = vstv %s104
    %v106 = vmul.f32 %v68, %v105
    %s107 = sld [smem:[#allocation4 + $0x3]]
    %v108 = vstv %s107
    %v109 = vadd.f32 %v106, %v108
    %s110 = sld [smem:[#allocation2 + $0x83]]
    %v111 = vstv %s110
    %v112 = vmul.f32 %v70, %v111
    %v113 = vadd.f32 %v109, %v112
    %v114 = vmax.f32 %v113, 0.0
    %s115 = sld [smem:[#allocation2 + $0x4]]
    %v116 = vstv %s115
    %v117 = vmul.f32 %v68, %v116
    %s118 = sld [smem:[#allocation4 + $0x4]]
    %v119 = vstv %s118
    %v120 = vadd.f32 %v117, %v119
    %s121 = sld [smem:[#allocation2 + $0x84]]
    %v122 = vstv %s121
    %v123 = vmul.f32 %v70, %v122
    %v124 = vadd.f32 %v120, %v123
    %v125 = vmax.f32 %v124, 0.0
    %s126 = sld [smem:[#allocation6]]
    %v127 = vstv %s126
    %v128 = vmul.f32 %v81, %v127
    %s129 = sld [smem:[#allocation7]]
    %v130 = vstv %s129
    %v131 = vadd.f32 %v128, %v130
    %s132 = sld [smem:[#allocation6 + $0x80]]
    %v133 = vstv %s132
    %v134 = vmul.f32 %v92, %v133
    %v135 = vadd.f32 %v131, %v134
    %s136 = sld [smem:[#allocation6 + $0x100]]
    %v137 = vstv %s136
    %v138 = vmul.f32 %v103, %v137
    %v139 = vadd.f32 %v135, %v138
    %s140 = sld [smem:[#allocation6 + $0x180]]
    %v141 = vstv %s140
    %v142 = vmul.f32 %v114, %v141
    %v143 = vadd.f32 %v139, %v142
    %s144 = sld [smem:[#allocation6 + $0x200]]
    %v145 = vstv %s144
    %v146 = vmul.f32 %v125, %v145
    %v147 = vadd.f32 %v143, %v146
    %v148 = vmax.f32 %v147, 0.0
    %s149 = sld [smem:[#allocation6 + $0x1]]
    %v150 = vstv %s149
    %v151 = vmul.f32 %v81, %v150
    %s152 = sld [smem:[#allocation7 + $0x1]]
    %v153 = vstv %s152
    %v154 = vadd.f32 %v151, %v153
    %s155 = sld [smem:[#allocation6 + $0x81]]
    %v156 = vstv %s155
    %v157 = vmul.f32 %v92, %v156
    %v158 = vadd.f32 %v154, %v157
    %s159 = sld [smem:[#allocation6 + $0x101]]
    %v160 = vstv %s159
    %v161 = vmul.f32 %v103, %v160
    %v162 = vadd.f32 %v158, %v161
    %s163 = sld [smem:[#allocation6 + $0x181]]
    %v164 = vstv %s163
    %v165 = vmul.f32 %v114, %v164
    %v166 = vadd.f32 %v162, %v165
    %s167 = sld [smem:[#allocation6 + $0x201]]
    %v168 = vstv %s167
    %v169 = vmul.f32 %v125, %v168
    %v170 = vadd.f32 %v166, %v169
    %v171 = vmax.f32 %v170, 0.0
    %v172 = vsub.f32 %v171, %v148
    %v173 = vand.u32 2147483647, %v172
    %v174 = vsub.f32 0.0, %v173
    %v175 = vmul.f32 %v174, 1.442695
    %v176 = vpow.pop %v175
    %v177 = vadd.f32 %v176, 1.0
    %v178 = vrcp.pop %v177
    %v179 = vmul.f32 %v177, %v178
    %v180 = vsub.f32 2.0, %v179
    %v181 = vmul.f32 %v178, %v180
    %v182 = vmul.f32 %v176, %v181
    %vm183 = vcmp.ge.f32.partialorder %v172, 0.0
    %v184 = vsel %vm183, %v182, %v181
    %185 = vst [vmem:[%s5] sm:$0xff] %v184
    %v186 = vsel %vm183, %v181, %v182
    %s187 = scalar_lea.vmem %s5, 8
    %188 = vst [vmem:[%s187] sm:$0xff] %v186
    // Predicated region
    $region38: #{simple_logistic_regression.1} parent=1 // pred_check
      _
    $region39: #{simple_logistic_regression.1} parent=1 // pred_check_branch
      %190 = sbr.rel (0) target = $region41
    $region40: #{simple_logistic_regression.1} parent=1 // pred_region
      _
    $region41: #{simple_logistic_regression.1} parent=1 // pred_fallthru
      _
    // Predicated region
    $region42: #{simple_logistic_regression.1} parent=1 // pred_check
      _
    $region43: #{simple_logistic_regression.1} parent=1 // pred_check_branch
      %192 = sbr.rel (0) target = $region45
    $region44: #{simple_logistic_regression.1} parent=1 // pred_region
      _
    $region45: #{simple_logistic_regression.1} parent=1 // pred_fallthru
      _
    %193 = vsyncpa [#allocation3], 1
    %194 = vsyncpa [#allocation5], 1
    %195 = vsyncpa [#allocation8], 1

</llo_original>
